<compile_context>
chip_gen: v5e
topology: v5e:2x2
jax: 0.10.0
libtpu: 0.0.40
codegen_flags: <defaults>
</compile_context>

<pallas_src>
import functools

import jax
import jax.numpy as jnp
from jax.experimental import pallas as pl
from jax.experimental.pallas import tpu as pltpu


# Per-half block budget (bytes). ~2 MiB already reaches ~85% of the HBM
# roofline for mem-bound elementwise; double-buffered total footprint is
# (2 in-halves + 1 out) * 2 buffers ~= 12 MiB.
_BLOCK_BUDGET = 2 << 20


def _flatten_view(C, H, W):
    """Lane-dense 2-D view (rows, lanes) of one channel half of one batch
    element (a contiguous C*H*W slab in HBM).  Prefer a lane dim that is a
    large multiple of 128 so stores are unmasked full-lane vst."""
    N = C * H * W
    for lanes in (2048, 1024, 512, 256, 128):
        if N % lanes == 0:
            return N // lanes, lanes
    # Rare fallback (C*H*W not a multiple of 128): keep (C, H*W).  Still
    # correct via the full-dim block exception; may use masked partial stores.
    return C, H * W


def _row_tile(R, lanes, itemsize, budget=_BLOCK_BUDGET):
    """Largest TR such that TR divides R, TR % 8 == 0 and the (TR, lanes)
    block fits `budget`.  Falls back to the full R (always legal via the
    full-dim exception); the caller sizes vmem_limit_bytes from the tile
    actually chosen, so the fallback cannot silently exceed the scoped VMEM
    default."""
    if R * lanes * itemsize <= budget:
        return R
    max_tr = (budget // (lanes * itemsize)) // 8 * 8
    for tr in range(max_tr, 0, -8):
        if R % tr == 0:
            return tr
    return R


def _compute_dtype(in_dtype):
    """f32 math for f32 inputs.  For bf16 inputs: bf16-native on v6e/v7x
    (native bf16 VPU/EUP), f32 upcast on v5e (no bf16 VPU/EUP)."""
    in_dtype = jnp.dtype(in_dtype)
    if in_dtype == jnp.dtype(jnp.float32):
        return jnp.dtype(jnp.float32)
    try:
        kind = jax.devices()[0].device_kind.lower()
    except Exception:
        kind = ""
    if "v5" in kind:
        return jnp.dtype(jnp.float32)
    return in_dtype


def _gated_activation_kernel(a_ref, g_ref, o_ref, *, compute_dtype):
    # a_ref / g_ref / o_ref: (TR, lanes) lane-dense tiles (leading batch/half
    # dims squeezed away by the BlockSpecs).
    a = a_ref[...].astype(compute_dtype)
    g = g_ref[...].astype(compute_dtype)
    # sigmoid(g) = 0.5 * (tanh(0.5*g) + 1): both transcendentals stay on the
    # EUP slot; no divide / Newton-refined reciprocal spills onto the VALU.
    gate = 0.5 * (jnp.tanh(0.5 * g) + 1.0)
    o_ref[...] = (jnp.tanh(a) * gate).astype(o_ref.dtype)


@functools.lru_cache(maxsize=None)
def _build_gated_activation(B, C, H, W, dtype_name, compute_dtype_name):
    dtype = jnp.dtype(dtype_name)
    compute_dtype = jnp.dtype(compute_dtype_name)
    R, lanes = _flatten_view(C, H, W)
    TR = _row_tile(R, lanes, dtype.itemsize)

    grid = (B, R // TR)

    def half_spec(half):
        # Contiguous (TR, lanes) slab of one half of one batch element.
        return pl.BlockSpec(
            (pl.Squeezed(), pl.Squeezed(), TR, lanes),
            lambda b, r, _h=half: (b, _h, r, 0))

    in_specs = [half_spec(0), half_spec(1)]   # tanh branch / sigmoid gate
    out_spec = pl.BlockSpec((pl.Squeezed(), TR, lanes), lambda b, r: (b, r, 0))

    # Double-buffered footprint: (2 input halves + 1 output) * 2 buffers,
    # plus headroom; capped at v7x's 64 MiB physical VMEM.
    blk_bytes = TR * lanes * dtype.itemsize
    vmem_bytes = min(64 << 20, max(32 << 20, 6 * blk_bytes + (8 << 20)))

    kernel = functools.partial(_gated_activation_kernel,
                               compute_dtype=compute_dtype)

    return pl.pallas_call(
        kernel,
        grid_spec=pltpu.PrefetchScalarGridSpec(
            num_scalar_prefetch=0,
            grid=grid,
            in_specs=in_specs,
            out_specs=out_spec,
        ),
        out_shape=jax.ShapeDtypeStruct((B, R, lanes), dtype),
        compiler_params=pltpu.CompilerParams(
            dimension_semantics=("parallel", "parallel"),
            vmem_limit_bytes=int(vmem_bytes)),
    )


def gated_activation(x):
    """Forward of GatedActivation: x is (B, 2*C, H, W); returns (B, C, H, W)."""
    B, C2, H, W = x.shape
    assert C2 % 2 == 0, "channel dim must be even for chunk(2, dim=1)"
    C = C2 // 2
    R, lanes = _flatten_view(C, H, W)
    fn = _build_gated_activation(B, C, H, W, str(x.dtype),
                                 str(_compute_dtype(x.dtype)))
    # Pure metadata reshape: each channel half of each batch element stays one
    # contiguous slab in HBM; lane dim is a (large) multiple of 128.
    xr = x.reshape(B, 2, R, lanes)
    # Same array passed twice; the two BlockSpecs select the tanh half and the
    # sigmoid half as two independent contiguous DMA streams.
    out = fn(xr, xr)
    return out.reshape(B, C, H, W)


if __name__ == "__main__":
    key = jax.random.PRNGKey(0)
    # GatedActivation sits after the gated PixelCNN conv, so it sees 2*dim
    # channels; dim=32 here -> 64 input channels.
    B, C2, H, W = 2, 64, 16, 16
    x = jax.random.normal(key, (B, C2, H, W), jnp.float32) * 2.0

    fwd = jax.jit(gated_activation)
    out = jax.block_until_ready(fwd(x))

    # pure-JAX reference of the PyTorch module's forward
    C = C2 // 2
    ref = jnp.tanh(x[:, :C]) * jax.nn.sigmoid(x[:, C:])

    assert out.shape == (B, C, H, W), out.shape
    assert bool(jnp.all(jnp.isfinite(out)))
    assert bool(jnp.allclose(out, ref, atol=1e-4, rtol=1e-4)), \
        float(jnp.max(jnp.abs(out - ref)))
    print("KERNEL_OK")
</pallas_src>

<mosaic_0001>
module attributes {stable_mosaic.version = 11 : i64} {
  func.func @_gated_activation_kernel(%arg0: i32, %arg1: i32, %arg2: memref<1x1x4x2048xf32, #tpu.memory_space<vmem>>, %arg3: memref<1x1x4x2048xf32, #tpu.memory_space<vmem>>, %arg4: memref<1x4x2048xf32, #tpu.memory_space<vmem>>) attributes {dimension_semantics = [#tpu.dimension_semantics<parallel>, #tpu.dimension_semantics<parallel>], iteration_bounds = array<i64: 2, 1>, scalar_prefetch = 0 : i64, scratch_operands = 0 : i64, tpu.core_type = #tpu.core_type<tc>, window_params = [{transform_indices = @transform_0, window_bounds = array<i64: 1, 1, 4, 2048>}, {transform_indices = @transform_1, window_bounds = array<i64: 1, 1, 4, 2048>}, {transform_indices = @transform_2, window_bounds = array<i64: 1, 4, 2048>}]} {
    %c0 = arith.constant 0 : index
    %c0_0 = arith.constant 0 : index
    %c0_1 = arith.constant 0 : index
    %c0_2 = arith.constant 0 : index
    %0 = vector.load %arg2[%c0, %c0_0, %c0_1, %c0_2] : memref<1x1x4x2048xf32, #tpu.memory_space<vmem>>, vector<1x1x4x2048xf32>
    %1 = vector.shape_cast %0 : vector<1x1x4x2048xf32> to vector<4x2048xf32>
    %c0_3 = arith.constant 0 : index
    %c0_4 = arith.constant 0 : index
    %c0_5 = arith.constant 0 : index
    %c0_6 = arith.constant 0 : index
    %2 = vector.load %arg3[%c0_3, %c0_4, %c0_5, %c0_6] : memref<1x1x4x2048xf32, #tpu.memory_space<vmem>>, vector<1x1x4x2048xf32>
    %3 = vector.shape_cast %2 : vector<1x1x4x2048xf32> to vector<4x2048xf32>
    %cst = arith.constant 5.000000e-01 : f32
    %4 = vector.broadcast %cst : f32 to vector<4x2048xf32>
    %5 = arith.mulf %4, %3 : vector<4x2048xf32>
    %6 = math.tanh %5 : vector<4x2048xf32>
    %cst_7 = arith.constant 1.000000e+00 : f32
    %7 = vector.broadcast %cst_7 : f32 to vector<4x2048xf32>
    %8 = arith.addf %6, %7 : vector<4x2048xf32>
    %cst_8 = arith.constant 5.000000e-01 : f32
    %9 = vector.broadcast %cst_8 : f32 to vector<4x2048xf32>
    %10 = arith.mulf %9, %8 : vector<4x2048xf32>
    %11 = math.tanh %1 : vector<4x2048xf32>
    %12 = arith.mulf %11, %10 : vector<4x2048xf32>
    %c0_9 = arith.constant 0 : index
    %c0_10 = arith.constant 0 : index
    %c0_11 = arith.constant 0 : index
    %13 = vector.load %arg4[%c0_9, %c0_10, %c0_11] : memref<1x4x2048xf32, #tpu.memory_space<vmem>>, vector<1x4x2048xf32>
    %14 = vector.shape_cast %13 : vector<1x4x2048xf32> to vector<4x2048xf32>
    %15 = vector.shape_cast %12 : vector<4x2048xf32> to vector<1x4x2048xf32>
    tpu.vector_store %arg4[%c0_9, %c0_10, %c0_11], %15 {strides = array<i32>} : memref<1x4x2048xf32, #tpu.memory_space<vmem>>, vector<1x4x2048xf32>,
    return
  }
  func.func @transform_0(%arg0: i32, %arg1: i32) -> (i32, i32, i32, i32) {
    %c0_i32 = arith.constant 0 : i32
    %c0_i32_0 = arith.constant 0 : i32
    %c0_i32_1 = arith.constant 0 : i32
    return %arg0, %c0_i32, %arg1, %c0_i32_0 : i32, i32, i32, i32
  }
  func.func @transform_1(%arg0: i32, %arg1: i32) -> (i32, i32, i32, i32) {
    %c1_i32 = arith.constant 1 : i32
    %c0_i32 = arith.constant 0 : i32
    %c0_i32_0 = arith.constant 0 : i32
    return %arg0, %c1_i32, %arg1, %c0_i32 : i32, i32, i32, i32
  }
  func.func @transform_2(%arg0: i32, %arg1: i32) -> (i32, i32, i32) {
    %c0_i32 = arith.constant 0 : i32
    %c0_i32_0 = arith.constant 0 : i32
    return %arg0, %arg1, %c0_i32 : i32, i32, i32
  }
}

</mosaic_0001>

<llo_original>
// kernel: gated_activation.1
$region0: #{gated_activation.1}
  #allocation0 [shape = 'u32[]', space=smem, size = 0x4, offset = 0x4, fixed_abs, tag = 'smem constant byte address 0x4 - core index']
  #allocation1 [shape = 'u32[72,128]{1,0:T(1,128)}', space=vmem, size = 0x9000, scoped, tag = 'internal scratch']
  %s0 = inlined_call_operand.vmem [shape: f32[2,2,4,2048], index: 0, kind: input, shape index: {}, may-alias: {0,1}]
  %s1 = inlined_call_operand.vmem [shape: f32[2,2,4,2048], index: 1, kind: input, shape index: {}, may-alias: {0,1}]
  %s2 = inlined_call_operand.vmem [shape: f32[2,4,2048], index: 2, kind: output, shape index: {}]
  %s3 = sld [smem:[#allocation0]]
  $region41: #{gated_activation.1} parent=0
    _
  %s5 = ssub.s32 1, %s3
  %s6 = scalar_select 0, %s5, %s3
  loop: start=0, step=1, limit=4
  $region2: #{gated_activation.1} parent=0 // loop_pre_header
    _
  $region3: #{gated_activation.1} parent=0 // loop_header
    %s8 = sphi 0, %s12
    %p9 = scmp.ge.s32.totalorder %s8, 4
    %s15 = sphi 0, %s27
    %s16 = sphi 0, %s23
    %s17 = sphi 0, %s15
    %s18 = sphi 0, %s16
    %s19 = sphi 0, %s17
    %s20 = sphi 0, %s18
    %s32 = sphi 0, %s34
    %s35 = sphi 0, %s32
    %s36 = sphi 0, %s35
    %s52 = sphi 0, %s36
    %s60 = sphi 0, %s62
    %s63 = sphi 0, %s60
    %s64 = sphi 0, %s63
    %s80 = sphi 0, %s64
    %s88 = sphi 0, %s90
    %s91 = sphi 0, %s88
    %s92 = sphi 0, %s91
    %s108 = sphi 0, %s92
  $region4: #{gated_activation.1} parent=0 // loop_header_branch
    %11 = sbr.rel (%p9) target = $region8
  $region5: #{gated_activation.1} parent=0 // loop_body
    %s13 = ssub.s32 %s8, 1
    %s14 = ssub.s32 %s8, 2
    %s21 = sadd.s32 1, %s16
    %p22 = scmp.ge.s32.totalorder %s21, 1
    %s23 = scalar_select %p22, 0, %s21
    %s24 = sadd.s32 1, %s15
    %s25 = scalar_select %p22, %s24, %s15
    %p26 = scmp.ge.s32.totalorder %s25, 2
    %s27 = scalar_select %p26, 0, %s25
    %s28 = ssub.s32 %s15, %s27
    %s29 = ssub.s32 %s16, %s23
    %s30 = sor.u32 %s28, %s29
    %p31 = scmp.eq.s32.totalorder %s30, 0
    %s33 = sadd.s32 %s32, 1
    %s34 = scalar_select %p31, %s32, %s33
    %p37 = pneg %p31
    %p38 = scmp.eq.s32.totalorder %s8, 1
    %p39 = por %p37, %p38
    %p40 = scmp.ne.s32.totalorder %s32, %s35
    %p41 = scmp.eq.s32.totalorder %s8, 0
    %p42 = por %p40, %p41
    %p43 = scmp.ne.s32.totalorder %s32, %s35
    %p44 = scmp.eq.s32.totalorder %s13, 1
    %p45 = por %p43, %p44
    %p46 = scmp.ne.s32.totalorder %s35, %s36
    %p47 = scmp.eq.s32.totalorder %s13, 0
    %p48 = por %p46, %p47
    %p49 = scmp.ne.s32.totalorder %s35, %s36
    %p50 = scmp.eq.s32.totalorder %s14, 1
    %p51 = por %p49, %p50
    %p53 = scmp.ne.s32.totalorder %s36, %s52
    %p54 = scmp.eq.s32.totalorder %s14, 0
    %p55 = por %p53, %p54
    %s56 = ssub.s32 %s15, %s27
    %s57 = ssub.s32 %s16, %s23
    %s58 = sor.u32 %s56, %s57
    %p59 = scmp.eq.s32.totalorder %s58, 0
    %s61 = sadd.s32 %s60, 1
    %s62 = scalar_select %p59, %s60, %s61
    %p65 = pneg %p59
    %p66 = scmp.eq.s32.totalorder %s8, 1
    %p67 = por %p65, %p66
    %p68 = scmp.ne.s32.totalorder %s60, %s63
    %p69 = scmp.eq.s32.totalorder %s8, 0
    %p70 = por %p68, %p69
    %p71 = scmp.ne.s32.totalorder %s60, %s63
    %p72 = scmp.eq.s32.totalorder %s13, 1
    %p73 = por %p71, %p72
    %p74 = scmp.ne.s32.totalorder %s63, %s64
    %p75 = scmp.eq.s32.totalorder %s13, 0
    %p76 = por %p74, %p75
    %p77 = scmp.ne.s32.totalorder %s63, %s64
    %p78 = scmp.eq.s32.totalorder %s14, 1
    %p79 = por %p77, %p78
    %p81 = scmp.ne.s32.totalorder %s64, %s80
    %p82 = scmp.eq.s32.totalorder %s14, 0
    %p83 = por %p81, %p82
    %s84 = ssub.s32 %s15, %s27
    %s85 = ssub.s32 %s16, %s23
    %s86 = sor.u32 %s84, %s85
    %p87 = scmp.eq.s32.totalorder %s86, 0
    %s89 = sadd.s32 %s88, 1
    %s90 = scalar_select %p87, %s88, %s89
    %p93 = pneg %p87
    %p94 = scmp.eq.s32.totalorder %s8, 1
    %p95 = por %p93, %p94
    %p96 = scmp.ne.s32.totalorder %s88, %s91
    %p97 = scmp.eq.s32.totalorder %s8, 0
    %p98 = por %p96, %p97
    %p99 = scmp.ne.s32.totalorder %s88, %s91
    %p100 = scmp.eq.s32.totalorder %s13, 1
    %p101 = por %p99, %p100
    %p102 = scmp.ne.s32.totalorder %s91, %s92
    %p103 = scmp.eq.s32.totalorder %s13, 0
    %p104 = por %p102, %p103
    %p105 = scmp.ne.s32.totalorder %s91, %s92
    %p106 = scmp.eq.s32.totalorder %s14, 1
    %p107 = por %p105, %p106
    %p109 = scmp.ne.s32.totalorder %s92, %s108
    %p110 = scmp.eq.s32.totalorder %s14, 0
    %p111 = por %p109, %p110
    %p112 = scmp.le.s32.totalorder 1, %s8
    %p113 = scmp.lt.s32.totalorder %s8, 3
    %p114 = pnand %p112, %p113
    %p115 = pneg %p114
    // Predicated region
    $region9: #{gated_activation.1} parent=5 // pred_check
      _
    $region10: #{gated_activation.1} parent=5 // pred_check_branch
      %117 = sbr.rel (%p114) target = $region12
    $region11: #{gated_activation.1} parent=5 // pred_region
      %s118 = ssub.s32 %s8, 1
    $region12: #{gated_activation.1} parent=5 // pred_fallthru
      _
    %p119 = scmp.lt.s32.totalorder %s8, 2
    // Predicated region
    $region13: #{gated_activation.1} parent=5 // pred_check
      %p120 = pneg %p119
    $region14: #{gated_activation.1} parent=5 // pred_check_branch
      %122 = sbr.rel (%p120) target = $region16
    $region15: #{gated_activation.1} parent=5 // pred_region
      // Predicated region
      $region17: #{gated_activation.1} parent=15 // pred_check
        %p123 = pneg %p42
      $region18: #{gated_activation.1} parent=15 // pred_check_branch
        %125 = sbr.rel (%p123) target = $region20
      $region19: #{gated_activation.1} parent=15 // pred_region
        %p126 = scmp.lt.s32.totalorder %s15, 1
        %s127 = scalar_select %p126, %s15, 1
        %p128 = scmp.lt.s32.totalorder %s16, 0
        %s129 = scalar_select %p128, %s16, 0
        %s130 = smul.addr %s129, 16
        %s131 = smul.addr %s127, 32
        %s132 = sadd.s32 %s130, %s131
        %s133 = smul.addr %s132, 4
        %s134 = scalar_lea.vmem %s0, %s133
      $region20: #{gated_activation.1} parent=15 // pred_fallthru
        _
      // Predicated region
      $region21: #{gated_activation.1} parent=15 // pred_check
        %p135 = pneg %p70
      $region22: #{gated_activation.1} parent=15 // pred_check_branch
        %137 = sbr.rel (%p135) target = $region24
      $region23: #{gated_activation.1} parent=15 // pred_region
        %p138 = scmp.lt.s32.totalorder %s15, 1
        %s139 = scalar_select %p138, %s15, 1
        %p140 = scmp.lt.s32.totalorder %s16, 0
        %s141 = scalar_select %p140, %s16, 0
        %s142 = smul.addr %s141, 16
        %s143 = sadd.s32 %s142, 16
        %s144 = smul.addr %s139, 32
        %s145 = sadd.s32 %s143, %s144
        %s146 = smul.addr %s145, 4
        %s147 = scalar_lea.vmem %s1, %s146
      $region24: #{gated_activation.1} parent=15 // pred_fallthru
        _
    $region16: #{gated_activation.1} parent=5 // pred_fallthru
      _
    %p148 = scmp.le.s32.totalorder 1, %s8
    %p149 = scmp.lt.s32.totalorder %s8, 3
    %p150 = pnand %p148, %p149
    %p151 = pneg %p150
    // Predicated region
    $region25: #{gated_activation.1} parent=5 // pred_check
      _
    $region26: #{gated_activation.1} parent=5 // pred_check_branch
      %153 = sbr.rel (%p150) target = $region28
    $region27: #{gated_activation.1} parent=5 // pred_region
      %s154 = ssub.s32 %s8, 1
      %p155 = scmp.lt.s32.totalorder %s17, 1
      %s156 = scalar_select %p155, %s17, 1
      %p157 = scmp.lt.s32.totalorder %s18, 0
      %s158 = scalar_select %p157, %s18, 0
      %s159 = smul.addr %s158, 16
      %s160 = smul.addr %s156, 32
      %s161 = sadd.s32 %s159, %s160
      %s162 = smul.addr %s161, 4
      %s163 = scalar_lea.vmem %s0, %s162
      %p164 = pneg %p48
      %p165 = pneg %p45
      %p166 = scmp.lt.s32.totalorder %s17, 1
      %s167 = scalar_select %p166, %s17, 1
      %p168 = scmp.lt.s32.totalorder %s18, 0
      %s169 = scalar_select %p168, %s18, 0
      %s170 = smul.addr %s169, 16
      %s171 = sadd.s32 %s170, 16
      %s172 = smul.addr %s167, 32
      %s173 = sadd.s32 %s171, %s172
      %s174 = smul.addr %s173, 4
      %s175 = scalar_lea.vmem %s1, %s174
      %p176 = pneg %p76
      %p177 = pneg %p73
      %p178 = pneg %p104
      %p179 = pneg %p101
      %p180 = scmp.lt.s32.totalorder %s17, 1
      %s181 = scalar_select %p180, %s17, 1
      %p182 = scmp.lt.s32.totalorder %s18, 0
      %s183 = scalar_select %p182, %s18, 0
      %s184 = smul.addr %s183, 16
      %s185 = smul.addr %s181, 16
      %s186 = sadd.s32 %s184, %s185
      %s187 = smul.addr %s186, 4
      %s188 = scalar_lea.vmem %s2, %s187
      %p189 = scmp.lt.s32.totalorder %s17, 1
      %s190 = scalar_select %p189, %s17, 1
      %p191 = scmp.lt.s32.totalorder %s18, 0
      %s192 = scalar_select %p191, %s18, 0
      %s193 = smul.addr %s192, 16
      %s194 = smul.addr %s190, 32
      %s195 = sadd.s32 %s193, %s194
      %s196 = smul.addr %s195, 4
      %s197 = scalar_lea.vmem %s0, %s196
      %p198 = scmp.lt.s32.totalorder %s17, 1
      %s199 = scalar_select %p198, %s17, 1
      %p200 = scmp.lt.s32.totalorder %s18, 0
      %s201 = scalar_select %p200, %s18, 0
      %s202 = smul.addr %s201, 16
      %s203 = sadd.s32 %s202, 16
      %s204 = smul.addr %s199, 32
      %s205 = sadd.s32 %s203, %s204
      %s206 = smul.addr %s205, 4
      %s207 = scalar_lea.vmem %s1, %s206
      %p208 = scmp.lt.s32.totalorder %s17, 1
      %s209 = scalar_select %p208, %s17, 1
      %p210 = scmp.lt.s32.totalorder %s18, 0
      %s211 = scalar_select %p210, %s18, 0
      %s212 = smul.addr %s211, 16
      %s213 = smul.addr %s209, 16
      %s214 = sadd.s32 %s212, %s213
      %s215 = smul.addr %s214, 4
      %s216 = scalar_lea.vmem %s2, %s215
      %v217 = vld [vmem:[%s197] sm:$0xff]
      %v218 = vld [vmem:[%s197 + $0x8] sm:$0xff]
      %v219 = vld [vmem:[%s197 + $0x10] sm:$0xff]
      %v220 = vld [vmem:[%s197 + $0x18] sm:$0xff]
      %v221 = vld [vmem:[%s197 + $0x20] sm:$0xff]
      %v222 = vld [vmem:[%s197 + $0x28] sm:$0xff]
      %v223 = vld [vmem:[%s197 + $0x30] sm:$0xff]
      %v224 = vld [vmem:[%s197 + $0x38] sm:$0xff]
      %v225 = vld [vmem:[%s207] sm:$0xff]
      %v226 = vld [vmem:[%s207 + $0x8] sm:$0xff]
      %v227 = vld [vmem:[%s207 + $0x10] sm:$0xff]
      %v228 = vld [vmem:[%s207 + $0x18] sm:$0xff]
      %v229 = vld [vmem:[%s207 + $0x20] sm:$0xff]
      %v230 = vld [vmem:[%s207 + $0x28] sm:$0xff]
      %v231 = vld [vmem:[%s207 + $0x30] sm:$0xff]
      %v232 = vld [vmem:[%s207 + $0x38] sm:$0xff]
      %v233 = vmul.f32 %v225, 0.5
      %v234 = vmul.f32 %v226, 0.5
      %v235 = vmul.f32 %v227, 0.5
      %v236 = vmul.f32 %v228, 0.5
      %v237 = vmul.f32 %v229, 0.5
      %v238 = vmul.f32 %v230, 0.5
      %v239 = vmul.f32 %v231, 0.5
      %v240 = vmul.f32 %v232, 0.5
      %v241 = vtanh.pop %v233
      %v242 = vtanh.pop %v234
      %v243 = vtanh.pop %v235
      %v244 = vtanh.pop %v236
      %v245 = vtanh.pop %v237
      %v246 = vtanh.pop %v238
      %v247 = vtanh.pop %v239
      %v248 = vtanh.pop %v240
      %v249 = vadd.f32 %v241, 1.0
      %v250 = vadd.f32 %v242, 1.0
      %v251 = vadd.f32 %v243, 1.0
      %v252 = vadd.f32 %v244, 1.0
      %v253 = vadd.f32 %v245, 1.0
      %v254 = vadd.f32 %v246, 1.0
      %v255 = vadd.f32 %v247, 1.0
      %v256 = vadd.f32 %v248, 1.0
      %v257 = vmul.f32 %v249, 0.5
      %v258 = vmul.f32 %v250, 0.5
      %v259 = vmul.f32 %v251, 0.5
      %v260 = vmul.f32 %v252, 0.5
      %v261 = vmul.f32 %v253, 0.5
      %v262 = vmul.f32 %v254, 0.5
      %v263 = vmul.f32 %v255, 0.5
      %v264 = vmul.f32 %v256, 0.5
      %v265 = vtanh.pop %v217
      %v266 = vtanh.pop %v218
      %v267 = vtanh.pop %v219
      %v268 = vtanh.pop %v220
      %v269 = vtanh.pop %v221
      %v270 = vtanh.pop %v222
      %v271 = vtanh.pop %v223
      %v272 = vtanh.pop %v224
      %v273 = vmul.f32 %v265, %v257
      %v274 = vmul.f32 %v266, %v258
      %v275 = vmul.f32 %v267, %v259
      %v276 = vmul.f32 %v268, %v260
      %v277 = vmul.f32 %v269, %v261
      %v278 = vmul.f32 %v270, %v262
      %v279 = vmul.f32 %v271, %v263
      %v280 = vmul.f32 %v272, %v264
      %281 = vst [vmem:[%s216] sm:$0xff] %v273
      %282 = vst [vmem:[%s216 + $0x8] sm:$0xff] %v274
      %283 = vst [vmem:[%s216 + $0x10] sm:$0xff] %v275
      %284 = vst [vmem:[%s216 + $0x18] sm:$0xff] %v276
      %285 = vst [vmem:[%s216 + $0x20] sm:$0xff] %v277
      %286 = vst [vmem:[%s216 + $0x28] sm:$0xff] %v278
      %287 = vst [vmem:[%s216 + $0x30] sm:$0xff] %v279
      %288 = vst [vmem:[%s216 + $0x38] sm:$0xff] %v280
      %p289 = scmp.lt.s32.totalorder %s17, 1
      %s290 = scalar_select %p289, %s17, 1
      %p291 = scmp.lt.s32.totalorder %s18, 0
      %s292 = scalar_select %p291, %s18, 0
      %s293 = smul.addr %s292, 16
      %s294 = smul.addr %s290, 16
      %s295 = sadd.s32 %s293, %s294
      %s296 = smul.addr %s295, 4
      %s297 = scalar_lea.vmem %s2, %s296
      // Predicated region
      $region29: #{gated_activation.1} parent=27 // pred_check
        %p298 = pneg %p101
      $region30: #{gated_activation.1} parent=27 // pred_check_branch
        %300 = sbr.rel (%p298) target = $region32
      $region31: #{gated_activation.1} parent=27 // pred_region
        _
      $region32: #{gated_activation.1} parent=27 // pred_fallthru
        _
    $region28: #{gated_activation.1} parent=5 // pred_fallthru
      _
    %p301 = scmp.le.s32.totalorder 2, %s8
    // Predicated region
    $region33: #{gated_activation.1} parent=5 // pred_check
      %p302 = pneg %p301
    $region34: #{gated_activation.1} parent=5 // pred_check_branch
      %304 = sbr.rel (%p302) target = $region36
    $region35: #{gated_activation.1} parent=5 // pred_region
      %s305 = ssub.s32 %s8, 2
      // Predicated region
      $region37: #{gated_activation.1} parent=35 // pred_check
        %p306 = pneg %p107
      $region38: #{gated_activation.1} parent=35 // pred_check_branch
        %308 = sbr.rel (%p306) target = $region40
      $region39: #{gated_activation.1} parent=35 // pred_region
        %p309 = scmp.lt.s32.totalorder %s19, 1
        %s310 = scalar_select %p309, %s19, 1
        %p311 = scmp.lt.s32.totalorder %s20, 0
        %s312 = scalar_select %p311, %s20, 0
        %s313 = smul.addr %s312, 16
        %s314 = smul.addr %s310, 16
        %s315 = sadd.s32 %s313, %s314
        %s316 = smul.addr %s315, 4
        %s317 = scalar_lea.vmem %s2, %s316
      $region40: #{gated_activation.1} parent=35 // pred_fallthru
        _
    $region36: #{gated_activation.1} parent=5 // pred_fallthru
      _
  $region6: #{gated_activation.1} parent=0 // loop_footer
    %s12 = sadd.s32 1, %s8
  $region7: #{gated_activation.1} parent=0 // loop_footer_branch
    %7 = sbr.rel target = $region3
  $region8: #{gated_activation.1} parent=0 // loop_exit
    _

</llo_original>
